<compile_context>
chip_gen: v5e
topology: v5e:2x2
jax: 0.10.0
libtpu: 0.0.40
codegen_flags: <defaults>
</compile_context>

<pallas_src>
import functools

import jax
import jax.numpy as jnp
import numpy as np
from jax import lax
from jax.experimental import pallas as pl
from jax.experimental.pallas import tpu as pltpu

KSIZE = 7
PAD = KSIZE // 2


def _cbam_kernel(x_ref, w1t_ref, w2t_ref, t_ref, o_ref):
    """One grid step over a (Bt, C, HW) slab of the batch.

    x_ref  : (Bt, C, HW)   activations, lane-dense last dim
    w1t_ref: (C, Cr)       SE fc1 weight, pre-transposed in the wrapper
    w2t_ref: (Cr, C)       SE fc2 weight, pre-transposed in the wrapper
    t_ref  : (2, HW, HW)   masked-Toeplitz tables for the 7x7 conv [avg, max]
    o_ref  : (Bt, C, HW)
    """
    x = x_ref[...].astype(jnp.float32)                     # (Bt, C, HW)
    Bt, C, HW = x.shape

    # ---------------- channel attention (SE block: avg-pool -> FC -> ReLU ->
    # FC -> sigmoid), matching the PyTorch ChannelAttention exactly -----------
    y = jnp.sum(x, axis=2) * (1.0 / HW)                    # (Bt, C)
    h = jnp.maximum(
        jnp.dot(y, w1t_ref[...], preferred_element_type=jnp.float32), 0.0)   # (Bt, Cr)
    att = jax.nn.sigmoid(
        jnp.dot(h, w2t_ref[...], preferred_element_type=jnp.float32))        # (Bt, C)
    x_ca = x * att[:, :, None]                             # (Bt, C, HW)

    # ---------------- spatial attention ----------------
    # avg/max over channels, then the 7x7 zero-padded cross-correlation is a
    # single MXU matmul per map against the precomputed masked-Toeplitz table
    # (zero padding is folded into T, so no rolls / boundary masks needed).
    avg_map = jnp.sum(x_ca, axis=1) * (1.0 / C)            # (Bt, HW)
    max_map = jnp.max(x_ca, axis=1)                        # (Bt, HW)
    conv = (jnp.dot(avg_map, t_ref[0], preferred_element_type=jnp.float32) +
            jnp.dot(max_map, t_ref[1], preferred_element_type=jnp.float32))  # (Bt, HW)
    sp = jax.nn.sigmoid(conv)                              # (Bt, HW)

    # single fused multiply + lane-dense store
    o_ref[...] = (x_ca * sp[:, None, :]).astype(o_ref.dtype)


def _toeplitz_table(conv_w, H, W):
    """(2, HW, HW) f32 masked-Toeplitz matrices for a 7x7 'SAME' cross-correlation.

    conv[b, p] = sum_q avg[b, q] * T[0, q, p] + sum_q max[b, q] * T[1, q, p]
    T[c, q, p] = w[c, qy - py + 3, qx - px + 3] when that tap is inside the
    kernel window, else 0 (which also encodes the zero padding).
    """
    HW = H * W
    yy, xx = np.divmod(np.arange(HW), W)
    ky = (yy[:, None] - yy[None, :]) + PAD                 # q (row) minus p (col)
    kx = (xx[:, None] - xx[None, :]) + PAD
    valid = (ky >= 0) & (ky < KSIZE) & (kx >= 0) & (kx < KSIZE)
    tap = np.where(valid, ky * KSIZE + kx, KSIZE * KSIZE).astype(np.int32)   # (HW, HW)

    w_flat = conv_w.reshape(2, KSIZE * KSIZE).astype(jnp.float32)            # (2, 49)
    w_pad = jnp.concatenate([w_flat, jnp.zeros((2, 1), jnp.float32)], axis=1)  # (2, 50)
    return jnp.take(w_pad, jnp.asarray(tap), axis=1)       # (2, HW, HW)


def _pick_bt(B, bytes_per_sample, *, min_steps=4, tile_cap=2 << 20):
    """Largest divisor bt of B such that the grid keeps >= min(B, min_steps)
    steps (DMA/compute overlap + v7x dual-TC sharding of the 'parallel' batch
    axis) while the activation tile stays <= tile_cap."""
    want_steps = min(B, max(min_steps, 2))
    bt = 1
    for cand in range(1, B + 1):
        if B % cand:
            continue
        if B // cand < want_steps:
            continue
        if cand * bytes_per_sample > tile_cap:
            continue
        bt = cand
    return bt
    # NOTE: if a single sample exceeds tile_cap we still fall back to bt=1; the
    # vmem_limit below is derived from the *actual* tile size so this remains
    # compilable well past the test shapes.


@functools.partial(jax.jit, donate_argnums=0)
def cbam_pallas(x, fc1_w, fc2_w, conv_w):
    """x: (B, C, H, W); fc1_w: (C//r, C); fc2_w: (C, C//r); conv_w: (1, 2, 7, 7)."""
    B, C, H, W = x.shape
    Cr = fc1_w.shape[0]
    HW = H * W
    # TODO(synk): HW that is not a multiple of 128 is still correct but falls
    # back to masked partial lane stores (perf only).

    bt = _pick_bt(B, C * HW * x.dtype.itemsize)
    x3 = x.reshape(B, C, HW)                    # lane-dense layout (free reshape)
    w1t = fc1_w.T.astype(jnp.float32)           # (C, Cr)  layout plumbing only
    w2t = fc2_w.T.astype(jnp.float32)           # (Cr, C)
    tmat = _toeplitz_table(conv_w, H, W)        # (2, HW, HW) constant conv table

    # Explicit VMEM budget: double-buffered in/out activation tiles, the
    # (small) double-buffered constants, f32 temporaries materialized in the
    # body, plus headroom.  Capped below v7x's 64 MiB physical VMEM.
    tile_bytes = bt * C * HW * x.dtype.itemsize
    const_bytes = (2 * HW * HW + 2 * C * Cr) * 4
    tmp_bytes = 8 * bt * C * HW * 4
    vmem_limit = int(min(48 << 20,
                         max(16 << 20,
                             4 * tile_bytes + 2 * const_bytes + tmp_bytes + (8 << 20))))

    out3 = pl.pallas_call(
        _cbam_kernel,
        out_shape=jax.ShapeDtypeStruct((B, C, HW), x.dtype),
        grid_spec=pltpu.PrefetchScalarGridSpec(
            num_scalar_prefetch=0,
            grid=(B // bt,),
            in_specs=[
                pl.BlockSpec((bt, C, HW), lambda b: (b, 0, 0)),
                # Constant index maps: fetched once, VMEM-resident across steps.
                pl.BlockSpec((C, Cr), lambda b: (0, 0)),
                pl.BlockSpec((Cr, C), lambda b: (0, 0)),
                pl.BlockSpec((2, HW, HW), lambda b: (0, 0, 0)),
            ],
            out_specs=pl.BlockSpec((bt, C, HW), lambda b: (b, 0, 0)),
        ),
        compiler_params=pltpu.CompilerParams(
            dimension_semantics=("parallel",),      # batch steps shard across v7x TCs
            vmem_limit_bytes=vmem_limit),
        input_output_aliases={0: 0},                # real in-place: x is donated
    )(x3, w1t, w2t, tmat)

    return out3.reshape(B, C, H, W)


def cbam_ref(x, fc1_w, fc2_w, conv_w):
    """Pure-JAX reference matching the PyTorch CBAMBlock forward pass."""
    y = jnp.mean(x, axis=(2, 3))                          # (B, C)
    h = jnp.maximum(y @ fc1_w.T, 0.0)
    s = jax.nn.sigmoid(h @ fc2_w.T)                       # (B, C)
    x_ca = x * s[:, :, None, None]
    avg = jnp.mean(x_ca, axis=1, keepdims=True)
    mx = jnp.max(x_ca, axis=1, keepdims=True)
    ym = jnp.concatenate([avg, mx], axis=1)               # (B, 2, H, W)
    conv = lax.conv_general_dilated(
        ym, conv_w, window_strides=(1, 1), padding="SAME",
        dimension_numbers=("NCHW", "OIHW", "NCHW"))
    return x_ca * jax.nn.sigmoid(conv)


if __name__ == "__main__":
    key = jax.random.PRNGKey(0)
    kx, k1, k2, kc = jax.random.split(key, 4)

    B, C, H, W = 4, 32, 16, 16
    reduction = 16
    Cr = C // reduction

    x = jax.random.normal(kx, (B, C, H, W), jnp.float32)
    # deterministic synthetic parameters (shapes per nn.Linear / nn.Conv2d, no bias)
    fc1_w = jax.random.normal(k1, (Cr, C), jnp.float32) * 0.1
    fc2_w = jax.random.normal(k2, (C, Cr), jnp.float32) * 0.1
    conv_w = jax.random.normal(kc, (1, 2, KSIZE, KSIZE), jnp.float32) * 0.1

    # Reference first: x is donated to the Pallas call below.
    ref = jax.block_until_ready(cbam_ref(x, fc1_w, fc2_w, conv_w))
    out = jax.block_until_ready(cbam_pallas(x, fc1_w, fc2_w, conv_w))

    assert out.shape == ref.shape
    max_err = float(jnp.max(jnp.abs(out - ref)))
    assert max_err < 1e-4, max_err
    print("KERNEL_OK")
</pallas_src>

<mosaic_0001>
module attributes {stable_mosaic.version = 11 : i64} {
  func.func @_cbam_kernel(%arg0: i32, %arg1: memref<1x32x256xf32, #tpu.memory_space<vmem>>, %arg2: memref<32x2xf32, #tpu.memory_space<vmem>>, %arg3: memref<2x32xf32, #tpu.memory_space<vmem>>, %arg4: memref<2x256x256xf32, #tpu.memory_space<vmem>>, %arg5: memref<1x32x256xf32, #tpu.memory_space<vmem>>) attributes {dimension_semantics = [#tpu.dimension_semantics<parallel>], iteration_bounds = array<i64: 4>, scalar_prefetch = 0 : i64, scratch_operands = 0 : i64, tpu.core_type = #tpu.core_type<tc>, window_params = [{transform_indices = @transform_0, window_bounds = array<i64: 1, 32, 256>}, {pipeline_mode = #tpu.pipeline_mode<synchronous>, transform_indices = @transform_1, window_bounds = array<i64: 32, 2>}, {pipeline_mode = #tpu.pipeline_mode<synchronous>, transform_indices = @transform_2, window_bounds = array<i64: 2, 32>}, {pipeline_mode = #tpu.pipeline_mode<synchronous>, transform_indices = @transform_3, window_bounds = array<i64: 2, 256, 256>}, {transform_indices = @transform_4, window_bounds = array<i64: 1, 32, 256>}]} {
    %c0 = arith.constant 0 : index
    %c0_0 = arith.constant 0 : index
    %c0_1 = arith.constant 0 : index
    %0 = vector.load %arg1[%c0, %c0_0, %c0_1] : memref<1x32x256xf32, #tpu.memory_space<vmem>>, vector<1x32x256xf32>
    %cst = arith.constant dense<0.000000e+00> : vector<1x32xf32>
    %1 = vector.multi_reduction <add>, %0, %cst [2] : vector<1x32x256xf32> to vector<1x32xf32>
    %cst_2 = arith.constant 3.906250e-03 : f32
    %2 = vector.broadcast %cst_2 : f32 to vector<1x32xf32>
    %3 = arith.mulf %1, %2 : vector<1x32xf32>
    %c0_3 = arith.constant 0 : index
    %c0_4 = arith.constant 0 : index
    %4 = vector.load %arg2[%c0_3, %c0_4] : memref<32x2xf32, #tpu.memory_space<vmem>>, vector<32x2xf32>
    %cst_5 = arith.constant dense<0.000000e+00> : vector<1x2xf32>
    %5 = tpu.matmul %3, %4, %cst_5 {dimension_numbers = #tpu.dot_dimension_numbers<[1], [0], [0], [1], [0, 0, 1, 1], [], []>} : vector<1x32xf32>, vector<32x2xf32>, vector<1x2xf32> -> vector<1x2xf32>
    %cst_6 = arith.constant 0.000000e+00 : f32
    %6 = vector.broadcast %cst_6 : f32 to vector<1x2xf32>
    %7 = arith.maximumf %5, %6 : vector<1x2xf32>
    %c0_7 = arith.constant 0 : index
    %c0_8 = arith.constant 0 : index
    %8 = vector.load %arg3[%c0_7, %c0_8] : memref<2x32xf32, #tpu.memory_space<vmem>>, vector<2x32xf32>
    %cst_9 = arith.constant dense<0.000000e+00> : vector<1x32xf32>
    %9 = tpu.matmul %7, %8, %cst_9 {dimension_numbers = #tpu.dot_dimension_numbers<[1], [0], [0], [1], [0, 0, 1, 1], [], []>} : vector<1x2xf32>, vector<2x32xf32>, vector<1x32xf32> -> vector<1x32xf32>
    %10 = arith.negf %9 : vector<1x32xf32>
    %11 = math.exp %10 : vector<1x32xf32>
    %cst_10 = arith.constant 1.000000e+00 : f32
    %12 = vector.broadcast %cst_10 : f32 to vector<1x32xf32>
    %13 = arith.addf %12, %11 : vector<1x32xf32>
    %14 = arith.divf %12, %13 : vector<1x32xf32>
    %15 = vector.shape_cast %14 : vector<1x32xf32> to vector<1x32x1xf32>
    %16 = vector.broadcast %15 : vector<1x32x1xf32> to vector<1x32x256xf32>
    %17 = arith.mulf %0, %16 : vector<1x32x256xf32>
    %cst_11 = arith.constant dense<0.000000e+00> : vector<1x256xf32>
    %18 = vector.multi_reduction <add>, %17, %cst_11 [1] : vector<1x32x256xf32> to vector<1x256xf32>
    %cst_12 = arith.constant 3.125000e-02 : f32
    %19 = vector.broadcast %cst_12 : f32 to vector<1x256xf32>
    %20 = arith.mulf %18, %19 : vector<1x256xf32>
    %cst_13 = arith.constant dense<0xFF800000> : vector<1x256xf32>
    %21 = vector.multi_reduction <maximumf>, %17, %cst_13 [1] : vector<1x32x256xf32> to vector<1x256xf32>
    %c0_14 = arith.constant 0 : index
    %c0_15 = arith.constant 0 : index
    %c0_16 = arith.constant 0 : index
    %22 = vector.load %arg4[%c0_14, %c0_15, %c0_16] : memref<2x256x256xf32, #tpu.memory_space<vmem>>, vector<1x256x256xf32>
    %23 = vector.shape_cast %22 : vector<1x256x256xf32> to vector<256x256xf32>
    %cst_17 = arith.constant dense<0.000000e+00> : vector<1x256xf32>
    %24 = tpu.matmul %20, %23, %cst_17 {dimension_numbers = #tpu.dot_dimension_numbers<[1], [0], [0], [1], [0, 0, 1, 1], [], []>} : vector<1x256xf32>, vector<256x256xf32>, vector<1x256xf32> -> vector<1x256xf32>
    %c1 = arith.constant 1 : index
    %c0_18 = arith.constant 0 : index
    %c0_19 = arith.constant 0 : index
    %25 = vector.load %arg4[%c1, %c0_18, %c0_19] : memref<2x256x256xf32, #tpu.memory_space<vmem>>, vector<1x256x256xf32>
    %26 = vector.shape_cast %25 : vector<1x256x256xf32> to vector<256x256xf32>
    %cst_20 = arith.constant dense<0.000000e+00> : vector<1x256xf32>
    %27 = tpu.matmul %21, %26, %cst_20 {dimension_numbers = #tpu.dot_dimension_numbers<[1], [0], [0], [1], [0, 0, 1, 1], [], []>} : vector<1x256xf32>, vector<256x256xf32>, vector<1x256xf32> -> vector<1x256xf32>
    %28 = arith.addf %24, %27 : vector<1x256xf32>
    %29 = arith.negf %28 : vector<1x256xf32>
    %30 = math.exp %29 : vector<1x256xf32>
    %cst_21 = arith.constant 1.000000e+00 : f32
    %31 = vector.broadcast %cst_21 : f32 to vector<1x256xf32>
    %32 = arith.addf %31, %30 : vector<1x256xf32>
    %33 = arith.divf %31, %32 : vector<1x256xf32>
    %34 = vector.shape_cast %33 : vector<1x256xf32> to vector<1x1x256xf32>
    %35 = vector.broadcast %34 : vector<1x1x256xf32> to vector<1x32x256xf32>
    %36 = arith.mulf %17, %35 : vector<1x32x256xf32>
    %c0_22 = arith.constant 0 : index
    %c0_23 = arith.constant 0 : index
    %c0_24 = arith.constant 0 : index
    %37 = vector.load %arg5[%c0_22, %c0_23, %c0_24] : memref<1x32x256xf32, #tpu.memory_space<vmem>>, vector<1x32x256xf32>
    tpu.vector_store %arg5[%c0_22, %c0_23, %c0_24], %36 {strides = array<i32>} : memref<1x32x256xf32, #tpu.memory_space<vmem>>, vector<1x32x256xf32>,
    return
  }
  func.func @transform_0(%arg0: i32) -> (i32, i32, i32) {
    %c0_i32 = arith.constant 0 : i32
    %c0_i32_0 = arith.constant 0 : i32
    %c0_i32_1 = arith.constant 0 : i32
    return %arg0, %c0_i32, %c0_i32_0 : i32, i32, i32
  }
  func.func @transform_1(%arg0: i32) -> (i32, i32) {
    %c0_i32 = arith.constant 0 : i32
    %c0_i32_0 = arith.constant 0 : i32
    %c0_i32_1 = arith.constant 0 : i32
    return %c0_i32, %c0_i32_0 : i32, i32
  }
  func.func @transform_2(%arg0: i32) -> (i32, i32) {
    %c0_i32 = arith.constant 0 : i32
    %c0_i32_0 = arith.constant 0 : i32
    %c0_i32_1 = arith.constant 0 : i32
    return %c0_i32, %c0_i32_0 : i32, i32
  }
  func.func @transform_3(%arg0: i32) -> (i32, i32, i32) {
    %c0_i32 = arith.constant 0 : i32
    %c0_i32_0 = arith.constant 0 : i32
    %c0_i32_1 = arith.constant 0 : i32
    %c0_i32_2 = arith.constant 0 : i32
    return %c0_i32, %c0_i32_0, %c0_i32_1 : i32, i32, i32
  }
  func.func @transform_4(%arg0: i32) -> (i32, i32, i32) {
    %c0_i32 = arith.constant 0 : i32
    %c0_i32_0 = arith.constant 0 : i32
    %c0_i32_1 = arith.constant 0 : i32
    return %arg0, %c0_i32, %c0_i32_0 : i32, i32, i32
  }
}

</mosaic_0001>

<llo_original>
// kernel: cbam_pallas.1
$region0: #{cbam_pallas.1}
  #allocation0 [shape = 'u32[]', space=smem, size = 0x4, offset = 0x4, fixed_abs, tag = 'smem constant byte address 0x4 - core index']
  #allocation1 [shape = 'u32[72,128]{1,0:T(1,128)}', space=vmem, size = 0x9000, scoped, tag = 'internal scratch']
  %s0 = inlined_call_operand.vmem [shape: f32[4,32,256], index: 0, kind: input, shape index: {}, may-alias: {0,4}]
  %s1 = inlined_call_operand.vmem [shape: f32[32,2], index: 1, kind: input, shape index: {}]
  %s2 = inlined_call_operand.vmem [shape: f32[2,32], index: 2, kind: input, shape index: {}]
  %s3 = inlined_call_operand.vmem [shape: f32[2,256,256], index: 3, kind: input, shape index: {}]
  %s4 = inlined_call_operand.vmem [shape: f32[4,32,256], index: 4, kind: output, shape index: {}, may-alias: {0,4}]
  %s5 = sld [smem:[#allocation0]]
  $region49: #{cbam_pallas.1} parent=0
    _
  %s7 = ssub.s32 1, %s5
  %s8 = scalar_select 0, %s7, %s5
  loop: start=0, step=1, limit=6
  $region2: #{cbam_pallas.1} parent=0 // loop_pre_header
    _
  $region3: #{cbam_pallas.1} parent=0 // loop_header
    %s10 = sphi 0, %s14
    %p11 = scmp.ge.s32.totalorder %s10, 6
    %s20 = sphi 0, %s22
    %s23 = sphi 0, %s20
    %s24 = sphi 0, %s23
    %s40 = sphi 0, %s24
    %s44 = sphi 0, %s44
    %s46 = sphi 0, %s44
    %s47 = sphi 0, %s46
    %s61 = sphi 0, %s47
    %s65 = sphi 0, %s65
    %s67 = sphi 0, %s65
    %s68 = sphi 0, %s67
    %s82 = sphi 0, %s68
    %s86 = sphi 0, %s86
    %s88 = sphi 0, %s86
    %s89 = sphi 0, %s88
    %s103 = sphi 0, %s89
    %s109 = sphi 0, %s111
    %s112 = sphi 0, %s109
    %s113 = sphi 0, %s112
    %s129 = sphi 0, %s113
  $region4: #{cbam_pallas.1} parent=0 // loop_header_branch
    %13 = sbr.rel (%p11) target = $region8
  $region5: #{cbam_pallas.1} parent=0 // loop_body
    %s15 = ssub.s32 %s10, 1
    %s16 = ssub.s32 %s10, 2
    %s17 = sadd.s32 %s10, 1
    %s18 = ssub.s32 %s10, %s17
    %p19 = scmp.eq.s32.totalorder %s18, 0
    %s21 = sadd.s32 %s20, 1
    %s22 = scalar_select %p19, %s20, %s21
    %p25 = pneg %p19
    %p26 = scmp.eq.s32.totalorder %s10, 3
    %p27 = por %p25, %p26
    %p28 = scmp.ne.s32.totalorder %s20, %s23
    %p29 = scmp.eq.s32.totalorder %s10, 0
    %p30 = por %p28, %p29
    %p31 = scmp.ne.s32.totalorder %s20, %s23
    %p32 = scmp.eq.s32.totalorder %s15, 3
    %p33 = por %p31, %p32
    %p34 = scmp.ne.s32.totalorder %s23, %s24
    %p35 = scmp.eq.s32.totalorder %s15, 0
    %p36 = por %p34, %p35
    %p37 = scmp.ne.s32.totalorder %s23, %s24
    %p38 = scmp.eq.s32.totalorder %s16, 3
    %p39 = por %p37, %p38
    %p41 = scmp.ne.s32.totalorder %s24, %s40
    %p42 = scmp.eq.s32.totalorder %s16, 0
    %p43 = por %p41, %p42
    %s45 = sadd.s32 %s44, 1
    %p48 = scmp.eq.s32.totalorder %s10, 3
    %p49 = scmp.ne.s32.totalorder %s44, %s46
    %p50 = scmp.eq.s32.totalorder %s10, 0
    %p51 = por %p49, %p50
    %p52 = scmp.ne.s32.totalorder %s44, %s46
    %p53 = scmp.eq.s32.totalorder %s15, 3
    %p54 = por %p52, %p53
    %p55 = scmp.ne.s32.totalorder %s46, %s47
    %p56 = scmp.eq.s32.totalorder %s15, 0
    %p57 = por %p55, %p56
    %p58 = scmp.ne.s32.totalorder %s46, %s47
    %p59 = scmp.eq.s32.totalorder %s16, 3
    %p60 = por %p58, %p59
    %p62 = scmp.ne.s32.totalorder %s47, %s61
    %p63 = scmp.eq.s32.totalorder %s16, 0
    %p64 = por %p62, %p63
    %s66 = sadd.s32 %s65, 1
    %p69 = scmp.eq.s32.totalorder %s10, 3
    %p70 = scmp.ne.s32.totalorder %s65, %s67
    %p71 = scmp.eq.s32.totalorder %s10, 0
    %p72 = por %p70, %p71
    %p73 = scmp.ne.s32.totalorder %s65, %s67
    %p74 = scmp.eq.s32.totalorder %s15, 3
    %p75 = por %p73, %p74
    %p76 = scmp.ne.s32.totalorder %s67, %s68
    %p77 = scmp.eq.s32.totalorder %s15, 0
    %p78 = por %p76, %p77
    %p79 = scmp.ne.s32.totalorder %s67, %s68
    %p80 = scmp.eq.s32.totalorder %s16, 3
    %p81 = por %p79, %p80
    %p83 = scmp.ne.s32.totalorder %s68, %s82
    %p84 = scmp.eq.s32.totalorder %s16, 0
    %p85 = por %p83, %p84
    %s87 = sadd.s32 %s86, 1
    %p90 = scmp.eq.s32.totalorder %s10, 3
    %p91 = scmp.ne.s32.totalorder %s86, %s88
    %p92 = scmp.eq.s32.totalorder %s10, 0
    %p93 = por %p91, %p92
    %p94 = scmp.ne.s32.totalorder %s86, %s88
    %p95 = scmp.eq.s32.totalorder %s15, 3
    %p96 = por %p94, %p95
    %p97 = scmp.ne.s32.totalorder %s88, %s89
    %p98 = scmp.eq.s32.totalorder %s15, 0
    %p99 = por %p97, %p98
    %p100 = scmp.ne.s32.totalorder %s88, %s89
    %p101 = scmp.eq.s32.totalorder %s16, 3
    %p102 = por %p100, %p101
    %p104 = scmp.ne.s32.totalorder %s89, %s103
    %p105 = scmp.eq.s32.totalorder %s16, 0
    %p106 = por %p104, %p105
    %s107 = ssub.s32 %s10, %s17
    %p108 = scmp.eq.s32.totalorder %s107, 0
    %s110 = sadd.s32 %s109, 1
    %s111 = scalar_select %p108, %s109, %s110
    %p114 = pneg %p108
    %p115 = scmp.eq.s32.totalorder %s10, 3
    %p116 = por %p114, %p115
    %p117 = scmp.ne.s32.totalorder %s109, %s112
    %p118 = scmp.eq.s32.totalorder %s10, 0
    %p119 = por %p117, %p118
    %p120 = scmp.ne.s32.totalorder %s109, %s112
    %p121 = scmp.eq.s32.totalorder %s15, 3
    %p122 = por %p120, %p121
    %p123 = scmp.ne.s32.totalorder %s112, %s113
    %p124 = scmp.eq.s32.totalorder %s15, 0
    %p125 = por %p123, %p124
    %p126 = scmp.ne.s32.totalorder %s112, %s113
    %p127 = scmp.eq.s32.totalorder %s16, 3
    %p128 = por %p126, %p127
    %p130 = scmp.ne.s32.totalorder %s113, %s129
    %p131 = scmp.eq.s32.totalorder %s16, 0
    %p132 = por %p130, %p131
    %p133 = scmp.le.s32.totalorder 1, %s10
    %p134 = scmp.lt.s32.totalorder %s10, 5
    %p135 = pnand %p133, %p134
    %p136 = pneg %p135
    // Predicated region
    $region9: #{cbam_pallas.1} parent=5 // pred_check
      _
    $region10: #{cbam_pallas.1} parent=5 // pred_check_branch
      %138 = sbr.rel (%p135) target = $region12
    $region11: #{cbam_pallas.1} parent=5 // pred_region
      %s139 = ssub.s32 %s10, 1
      // Predicated region
      $region13: #{cbam_pallas.1} parent=11 // pred_check
        %p140 = pneg %p57
      $region14: #{cbam_pallas.1} parent=11 // pred_check_branch
        %142 = sbr.rel (%p140) target = $region16
      $region15: #{cbam_pallas.1} parent=11 // pred_region
        _
      $region16: #{cbam_pallas.1} parent=11 // pred_fallthru
        _
      // Predicated region
      $region17: #{cbam_pallas.1} parent=11 // pred_check
        %p143 = pneg %p78
      $region18: #{cbam_pallas.1} parent=11 // pred_check_branch
        %145 = sbr.rel (%p143) target = $region20
      $region19: #{cbam_pallas.1} parent=11 // pred_region
        _
      $region20: #{cbam_pallas.1} parent=11 // pred_fallthru
        _
      // Predicated region
      $region21: #{cbam_pallas.1} parent=11 // pred_check
        %p146 = pneg %p99
      $region22: #{cbam_pallas.1} parent=11 // pred_check_branch
        %148 = sbr.rel (%p146) target = $region24
      $region23: #{cbam_pallas.1} parent=11 // pred_region
        _
      $region24: #{cbam_pallas.1} parent=11 // pred_fallthru
        _
    $region12: #{cbam_pallas.1} parent=5 // pred_fallthru
      _
    %p149 = scmp.lt.s32.totalorder %s10, 4
    // Predicated region
    $region25: #{cbam_pallas.1} parent=5 // pred_check
      %p150 = pneg %p149
    $region26: #{cbam_pallas.1} parent=5 // pred_check_branch
      %152 = sbr.rel (%p150) target = $region28
    $region27: #{cbam_pallas.1} parent=5 // pred_region
      // Predicated region
      $region29: #{cbam_pallas.1} parent=27 // pred_check
        %p153 = pneg %p30
      $region30: #{cbam_pallas.1} parent=27 // pred_check_branch
        %155 = sbr.rel (%p153) target = $region32
      $region31: #{cbam_pallas.1} parent=27 // pred_region
        %p156 = scmp.lt.s32.totalorder %s10, 3
        %s157 = scalar_select %p156, %s10, 3
        %s158 = smul.addr %s157, 8
        %s159 = smul.addr %s158, 8
        %s160 = scalar_lea.vmem %s0, %s159
      $region32: #{cbam_pallas.1} parent=27 // pred_fallthru
        _
    $region28: #{cbam_pallas.1} parent=5 // pred_fallthru
      _
    %p161 = scmp.le.s32.totalorder 1, %s10
    %p162 = scmp.lt.s32.totalorder %s10, 5
    %p163 = pnand %p161, %p162
    %p164 = pneg %p163
    // Predicated region
    $region33: #{cbam_pallas.1} parent=5 // pred_check
      _
    $region34: #{cbam_pallas.1} parent=5 // pred_check_branch
      %166 = sbr.rel (%p163) target = $region36
    $region35: #{cbam_pallas.1} parent=5 // pred_region
      %s167 = ssub.s32 %s10, 1
      %p168 = scmp.lt.s32.totalorder %s15, 3
      %s169 = scalar_select %p168, %s15, 3
      %s170 = smul.addr %s169, 8
      %s171 = smul.addr %s170, 8
      %s172 = scalar_lea.vmem %s0, %s171
      %p173 = pneg %p36
      %p174 = pneg %p33
      %p175 = pneg %p57
      %p176 = pneg %p54
      %p177 = pneg %p78
      %p178 = pneg %p75
      %p179 = pneg %p99
      %p180 = pneg %p96
      %p181 = pneg %p125
      %p182 = pneg %p122
      %p183 = scmp.lt.s32.totalorder %s15, 3
      %s184 = scalar_select %p183, %s15, 3
      %s185 = smul.addr %s184, 8
      %s186 = smul.addr %s185, 8
      %s187 = scalar_lea.vmem %s4, %s186
      %p188 = scmp.lt.s32.totalorder %s15, 3
      %s189 = scalar_select %p188, %s15, 3
      %s190 = smul.addr %s189, 8
      %s191 = smul.addr %s190, 8
      %s192 = scalar_lea.vmem %s0, %s191
      %p193 = scmp.lt.s32.totalorder %s15, 3
      %s194 = scalar_select %p193, %s15, 3
      %s195 = smul.addr %s194, 8
      %s196 = smul.addr %s195, 8
      %s197 = scalar_lea.vmem %s4, %s196
      %v198 = vld [vmem:[%s192] sm:$0xff]
      %v199 = vld [vmem:[%s192 + $0x8] sm:$0xff]
      %v200 = vld [vmem:[%s192 + $0x10] sm:$0xff]
      %v201 = vld [vmem:[%s192 + $0x18] sm:$0xff]
      %v202 = vld [vmem:[%s192 + $0x20] sm:$0xff]
      %v203 = vld [vmem:[%s192 + $0x28] sm:$0xff]
      %v204 = vld [vmem:[%s192 + $0x30] sm:$0xff]
      %v205 = vld [vmem:[%s192 + $0x38] sm:$0xff]
      %v206 = vadd.f32 %v198, %v199
      %207 = vadd.xlane.f32.xlu0 %v206
      %v208 = vpop.xlane.xlu0 %207
      %v209 = vadd.f32 %v200, %v201
      %210 = vadd.xlane.f32.xlu0 %v209
      %v211 = vpop.xlane.xlu0 %210
      %v212 = vadd.f32 %v202, %v203
      %213 = vadd.xlane.f32.xlu0 %v212
      %v214 = vpop.xlane.xlu0 %213
      %v215 = vadd.f32 %v204, %v205
      %216 = vadd.xlane.f32.xlu0 %v215
      %v217 = vpop.xlane.xlu0 %216
      %v218 = vmul.f32 %v208, 0.00390625
      %v219 = vmul.f32 %v211, 0.00390625
      %v220 = vmul.f32 %v214, 0.00390625
      %v221 = vmul.f32 %v217, 0.00390625
      %v222 = vld [vmem:[%s1] sm:$0xff]
      %v223 = vld [vmem:[%s1 + $0x8] sm:$0xff]
      %v224 = vld [vmem:[%s1 + $0x10] sm:$0xff]
      %v225 = vld [vmem:[%s1 + $0x18] sm:$0xff]
      %v230 = vlaneseq
      %v231 = vand.u32 %v230, 127
      %v232 = vperm.slane %v218, %v231
      %v233 = vadd.s32 %v231, 4294967288
      %v234 = vperm.slane %v219, %v233
      %vm235 = vcmask 130112
      %v236 = vsel %vm235, %v234, %v232
      %v237 = vadd.s32 %v231, 4294967280
      %v238 = vperm.slane %v220, %v237
      %vm239 = vcmask 195712
      %v240 = vsel %vm239, %v238, %v236
      %v241 = vadd.s32 %v231, 4294967272
      %v242 = vperm.slane %v221, %v241
      %vm243 = vcmask 261312
      %v244 = vsel %vm243, %v242, %v240
      %vm245 = vcmask 261120
      %v246 = vsel %vm245, %v244, 0
      %248 = vmatpush.msra.mxu0 0.0
      %249 = vmatpush.msra.mxu0 0.0
      %250 = vmatpush.msra.mxu0 0.0
      %251 = vmatpush.msra.mxu0 0.0
      %252 = vmatpush.msra.mxu0 0.0
      %253 = vmatpush.msra.mxu0 0.0
      %254 = vmatpush.msra.mxu0 0.0
      %255 = vmatpush.msra.mxu0 0.0
      %256 = vmatpush.msra.mxu0 0.0
      %257 = vmatpush.msra.mxu0 0.0
      %258 = vmatpush.msra.mxu0 0.0
      %259 = vmatpush.msra.mxu0 0.0
      %260 = vmatpush.msra.mxu0 %v225
      %261 = vmatpush.msra.mxu0 %v224
      %262 = vmatpush.msra.mxu0 %v223
      %263 = vmatpush.msra.mxu0 %v222
      %264 = vmatmul.f32.gmra.mxu0 %v246
      %v265 = vpop.f32.mrf.mxu0
      %v266 = vadd.f32 0.0, %v265
      %267 = vdwg.mxu0
      %v268 = vmax.f32 %v266, 0.0
      %v269 = vld [vmem:[%s2] sm:$0x3]
      %vm270 = vcmask 15360
      %v272 = vsel %vm270, %v268, 0
      %vm274 = vcmask 1041408
      %v276 = vsel %vm274, %v269, 0
      %278 = vmatpush.msra.mxu0 0.0
      %279 = vmatpush.msra.mxu0 0.0
      %280 = vmatpush.msra.mxu0 0.0
      %281 = vmatpush.msra.mxu0 0.0
      %282 = vmatpush.msra.mxu0 0.0
      %283 = vmatpush.msra.mxu0 0.0
      %284 = vmatpush.msra.mxu0 0.0
      %285 = vmatpush.msra.mxu0 0.0
      %286 = vmatpush.msra.mxu0 0.0
      %287 = vmatpush.msra.mxu0 0.0
      %288 = vmatpush.msra.mxu0 0.0
      %289 = vmatpush.msra.mxu0 0.0
      %290 = vmatpush.msra.mxu0 0.0
      %291 = vmatpush.msra.mxu0 0.0
      %292 = vmatpush.msra.mxu0 0.0
      %293 = vmatpush.msra.mxu0 %v276
      %294 = vmatmul.f32.gmra.mxu0 %v272
      %v295 = vpop.f32.mrf.mxu0
      %v296 = vadd.f32 0.0, %v295
      %297 = vdwg.mxu0
      %v298 = vxor.u32 %v296, 2147483648
      %v299 = vmul.f32 %v298, 1.442695
      %v300 = vpow.pop %v299
      %v301 = vadd.f32 %v300, 1.0
      %v302 = vrcp.pop %v301
      %v303 = vmul.f32 %v301, %v302
      %v304 = vsub.f32 1.0, %v303
      %v305 = vmul.f32 %v302, %v304
      %v306 = vadd.f32 %v302, %v305
      %vm307 = vweird.f32 %v301
      %vm308 = vweird.f32 %v302
      %vm309 = vmor %vm307, %vm308
      %v310 = vsel %vm309, %v302, %v306
      %v311 = vand.u32 2147483647, %v301
      %vm312 = vcmp.eq.f32.partialorder %v311, 8.507059e+37
      %v313 = vand.u32 %v301, 2147483648
      %v314 = vor.u32 1.1754944e-38, %v313
      %v315 = vsel %vm312, %v314, %v310
      %v316 = vmul.f32 1.0, %v315
      %v317 = vperm.slane %v316, 0
      %v318 = vlaneseq
      %v319 = vshrl.u32 %v318, 7
      %321 = vset.pattern.permute.xlu0 %v319
      %322 = vperm.xlu0 %321, %v317
      %v323 = vpop.permute.xlu0 %322
      %v324 = vlaneseq
      %v325 = vshrl.u32 %v324, 7
      %v326 = vadd.s32 %v325, 8
      %327 = vset.pattern.permute.xlu0 %v326
      %328 = vperm.xlu0 %327, %v317
      %v329 = vpop.permute.xlu0 %328
      %v330 = vlaneseq
      %v331 = vshrl.u32 %v330, 7
      %v332 = vadd.s32 %v331, 16
      %333 = vset.pattern.permute.xlu0 %v332
      %334 = vperm.xlu0 %333, %v317
      %v335 = vpop.permute.xlu0 %334
      %v336 = vlaneseq
      %v337 = vshrl.u32 %v336, 7
      %v338 = vadd.s32 %v337, 24
      %339 = vset.pattern.permute.xlu0 %v338
      %340 = vperm.xlu0 %339, %v317
      %v341 = vpop.permute.xlu0 %340
      %v342 = vmul.f32 %v198, %v323
      %v343 = vmul.f32 %v199, %v323
      %v344 = vmul.f32 %v200, %v329
      %v345 = vmul.f32 %v201, %v329
      %v346 = vmul.f32 %v202, %v335
      %v347 = vmul.f32 %v203, %v335
      %v348 = vmul.f32 %v204, %v341
      %v349 = vmul.f32 %v205, %v341
      %v350 = vadd.f32 %v342, %v344
      %v351 = vadd.f32 %v350, %v346
      %v352 = vadd.f32 %v351, %v348
      %v353 = vrot.slane %v352, 4
      %v354 = vadd.f32 %v352, %v353
      %v355 = vrot.slane %v354, 2
      %v356 = vadd.f32 %v354, %v355
      %v357 = vrot.slane %v356, 1
      %v358 = vadd.f32 %v356, %v357
      %v359 = vadd.f32 %v343, %v345
      %v360 = vadd.f32 %v359, %v347
      %v361 = vadd.f32 %v360, %v349
      %v362 = vrot.slane %v361, 4
      %v363 = vadd.f32 %v361, %v362
      %v364 = vrot.slane %v363, 2
      %v365 = vadd.f32 %v363, %v364
      %v366 = vrot.slane %v365, 1
      %v367 = vadd.f32 %v365, %v366
      %v368 = vmul.f32 %v358, 0.03125
      %v369 = vmul.f32 %v367, 0.03125
      %v370 = vmax.f32 %v342, %v346
      %v371 = vmax.f32 %v344, %v348
      %v372 = vmax.f32 %v370, %v371
      %v373 = vrot.slane %v372, 4
      %v374 = vmax.f32 %v372, %v373
      %v375 = vrot.slane %v374, 2
      %v376 = vmax.f32 %v374, %v375
      %v377 = vrot.slane %v376, 1
      %v378 = vmax.f32 %v376, %v377
      %v379 = vmax.f32 %v343, %v347
      %v380 = vmax.f32 %v345, %v349
      %v381 = vmax.f32 %v379, %v380
      %v382 = vrot.slane %v381, 4
      %v383 = vmax.f32 %v381, %v382
      %v384 = vrot.slane %v383, 2
      %v385 = vmax.f32 %v383, %v384
      %v386 = vrot.slane %v385, 1
      %v387 = vmax.f32 %v385, %v386
      %v388 = vld [vmem:[%s3] sm:$0xff]
      %v389 = vld [vmem:[%s3 + $0x8] sm:$0xff]
      %v390 = vld [vmem:[%s3 + $0x10] sm:$0xff]
      %v391 = vld [vmem:[%s3 + $0x18] sm:$0xff]
      %v392 = vld [vmem:[%s3 + $0x20] sm:$0xff]
      %v393 = vld [vmem:[%s3 + $0x28] sm:$0xff]
      %v394 = vld [vmem:[%s3 + $0x30] sm:$0xff]
      %v395 = vld [vmem:[%s3 + $0x38] sm:$0xff]
      %v396 = vld [vmem:[%s3 + $0x40] sm:$0xff]
      %v397 = vld [vmem:[%s3 + $0x48] sm:$0xff]
      %v398 = vld [vmem:[%s3 + $0x50] sm:$0xff]
      %v399 = vld [vmem:[%s3 + $0x58] sm:$0xff]
      %v400 = vld [vmem:[%s3 + $0x60] sm:$0xff]
      %v401 = vld [vmem:[%s3 + $0x68] sm:$0xff]
      %v402 = vld [vmem:[%s3 + $0x70] sm:$0xff]
      %v403 = vld [vmem:[%s3 + $0x78] sm:$0xff]
      %v404 = vld [vmem:[%s3 + $0x80] sm:$0xff]
      %v405 = vld [vmem:[%s3 + $0x88] sm:$0xff]
      %v406 = vld [vmem:[%s3 + $0x90] sm:$0xff]
      %v407 = vld [vmem:[%s3 + $0x98] sm:$0xff]
      %v408 = vld [vmem:[%s3 + $0xa0] sm:$0xff]
      %v409 = vld [vmem:[%s3 + $0xa8] sm:$0xff]
      %v410 = vld [vmem:[%s3 + $0xb0] sm:$0xff]
      %v411 = vld [vmem:[%s3 + $0xb8] sm:$0xff]
      %v412 = vld [vmem:[%s3 + $0xc0] sm:$0xff]
      %v413 = vld [vmem:[%s3 + $0xc8] sm:$0xff]
      %v414 = vld [vmem:[%s3 + $0xd0] sm:$0xff]
      %v415 = vld [vmem:[%s3 + $0xd8] sm:$0xff]
      %v416 = vld [vmem:[%s3 + $0xe0] sm:$0xff]
      %v417 = vld [vmem:[%s3 + $0xe8] sm:$0xff]
      %v418 = vld [vmem:[%s3 + $0xf0] sm:$0xff]
      %v419 = vld [vmem:[%s3 + $0xf8] sm:$0xff]
      %v420 = vld [vmem:[%s3 + $0x100] sm:$0xff]
      %v421 = vld [vmem:[%s3 + $0x108] sm:$0xff]
      %v422 = vld [vmem:[%s3 + $0x110] sm:$0xff]
      %v423 = vld [vmem:[%s3 + $0x118] sm:$0xff]
      %v424 = vld [vmem:[%s3 + $0x120] sm:$0xff]
      %v425 = vld [vmem:[%s3 + $0x128] sm:$0xff]
      %v426 = vld [vmem:[%s3 + $0x130] sm:$0xff]
      %v427 = vld [vmem:[%s3 + $0x138] sm:$0xff]
      %v428 = vld [vmem:[%s3 + $0x140] sm:$0xff]
      %v429 = vld [vmem:[%s3 + $0x148] sm:$0xff]
      %v430 = vld [vmem:[%s3 + $0x150] sm:$0xff]
      %v431 = vld [vmem:[%s3 + $0x158] sm:$0xff]
      %v432 = vld [vmem:[%s3 + $0x160] sm:$0xff]
      %v433 = vld [vmem:[%s3 + $0x168] sm:$0xff]
      %v434 = vld [vmem:[%s3 + $0x170] sm:$0xff]
      %v435 = vld [vmem:[%s3 + $0x178] sm:$0xff]
      %v436 = vld [vmem:[%s3 + $0x180] sm:$0xff]
      %v437 = vld [vmem:[%s3 + $0x188] sm:$0xff]
      %v438 = vld [vmem:[%s3 + $0x190] sm:$0xff]
      %v439 = vld [vmem:[%s3 + $0x198] sm:$0xff]
      %v440 = vld [vmem:[%s3 + $0x1a0] sm:$0xff]
      %v441 = vld [vmem:[%s3 + $0x1a8] sm:$0xff]
      %v442 = vld [vmem:[%s3 + $0x1b0] sm:$0xff]
      %v443 = vld [vmem:[%s3 + $0x1b8] sm:$0xff]
      %v444 = vld [vmem:[%s3 + $0x1c0] sm:$0xff]
      %v445 = vld [vmem:[%s3 + $0x1c8] sm:$0xff]
      %v446 = vld [vmem:[%s3 + $0x1d0] sm:$0xff]
      %v447 = vld [vmem:[%s3 + $0x1d8] sm:$0xff]
      %v448 = vld [vmem:[%s3 + $0x1e0] sm:$0xff]
      %v449 = vld [vmem:[%s3 + $0x1e8] sm:$0xff]
      %v450 = vld [vmem:[%s3 + $0x1f0] sm:$0xff]
      %v451 = vld [vmem:[%s3 + $0x1f8] sm:$0xff]
      %s452 = scalar_lea.vmem %s3, 512
      %v453 = vld [vmem:[%s452] sm:$0xff]
      %v454 = vld [vmem:[%s452 + $0x8] sm:$0xff]
      %v455 = vld [vmem:[%s452 + $0x10] sm:$0xff]
      %v456 = vld [vmem:[%s452 + $0x18] sm:$0xff]
      %v457 = vld [vmem:[%s452 + $0x20] sm:$0xff]
      %v458 = vld [vmem:[%s452 + $0x28] sm:$0xff]
      %v459 = vld [vmem:[%s452 + $0x30] sm:$0xff]
      %v460 = vld [vmem:[%s452 + $0x38] sm:$0xff]
      %v461 = vld [vmem:[%s452 + $0x40] sm:$0xff]
      %v462 = vld [vmem:[%s452 + $0x48] sm:$0xff]
      %v463 = vld [vmem:[%s452 + $0x50] sm:$0xff]
      %v464 = vld [vmem:[%s452 + $0x58] sm:$0xff]
      %v465 = vld [vmem:[%s452 + $0x60] sm:$0xff]
      %v466 = vld [vmem:[%s452 + $0x68] sm:$0xff]
      %v467 = vld [vmem:[%s452 + $0x70] sm:$0xff]
      %v468 = vld [vmem:[%s452 + $0x78] sm:$0xff]
      %v469 = vld [vmem:[%s452 + $0x80] sm:$0xff]
      %v470 = vld [vmem:[%s452 + $0x88] sm:$0xff]
      %v471 = vld [vmem:[%s452 + $0x90] sm:$0xff]
      %v472 = vld [vmem:[%s452 + $0x98] sm:$0xff]
      %v473 = vld [vmem:[%s452 + $0xa0] sm:$0xff]
      %v474 = vld [vmem:[%s452 + $0xa8] sm:$0xff]
      %v475 = vld [vmem:[%s452 + $0xb0] sm:$0xff]
      %v476 = vld [vmem:[%s452 + $0xb8] sm:$0xff]
      %v477 = vld [vmem:[%s452 + $0xc0] sm:$0xff]
      %v478 = vld [vmem:[%s452 + $0xc8] sm:$0xff]
      %v479 = vld [vmem:[%s452 + $0xd0] sm:$0xff]
      %v480 = vld [vmem:[%s452 + $0xd8] sm:$0xff]
      %v481 = vld [vmem:[%s452 + $0xe0] sm:$0xff]
      %v482 = vld [vmem:[%s452 + $0xe8] sm:$0xff]
      %v483 = vld [vmem:[%s452 + $0xf0] sm:$0xff]
      %v484 = vld [vmem:[%s452 + $0xf8] sm:$0xff]
      %v485 = vld [vmem:[%s452 + $0x100] sm:$0xff]
      %v486 = vld [vmem:[%s452 + $0x108] sm:$0xff]
      %v487 = vld [vmem:[%s452 + $0x110] sm:$0xff]
      %v488 = vld [vmem:[%s452 + $0x118] sm:$0xff]
      %v489 = vld [vmem:[%s452 + $0x120] sm:$0xff]
      %v490 = vld [vmem:[%s452 + $0x128] sm:$0xff]
      %v491 = vld [vmem:[%s452 + $0x130] sm:$0xff]
      %v492 = vld [vmem:[%s452 + $0x138] sm:$0xff]
      %v493 = vld [vmem:[%s452 + $0x140] sm:$0xff]
      %v494 = vld [vmem:[%s452 + $0x148] sm:$0xff]
      %v495 = vld [vmem:[%s452 + $0x150] sm:$0xff]
      %v496 = vld [vmem:[%s452 + $0x158] sm:$0xff]
      %v497 = vld [vmem:[%s452 + $0x160] sm:$0xff]
      %v498 = vld [vmem:[%s452 + $0x168] sm:$0xff]
      %v499 = vld [vmem:[%s452 + $0x170] sm:$0xff]
      %v500 = vld [vmem:[%s452 + $0x178] sm:$0xff]
      %v501 = vld [vmem:[%s452 + $0x180] sm:$0xff]
      %v502 = vld [vmem:[%s452 + $0x188] sm:$0xff]
      %v503 = vld [vmem:[%s452 + $0x190] sm:$0xff]
      %v504 = vld [vmem:[%s452 + $0x198] sm:$0xff]
      %v505 = vld [vmem:[%s452 + $0x1a0] sm:$0xff]
      %v506 = vld [vmem:[%s452 + $0x1a8] sm:$0xff]
      %v507 = vld [vmem:[%s452 + $0x1b0] sm:$0xff]
      %v508 = vld [vmem:[%s452 + $0x1b8] sm:$0xff]
      %v509 = vld [vmem:[%s452 + $0x1c0] sm:$0xff]
      %v510 = vld [vmem:[%s452 + $0x1c8] sm:$0xff]
      %v511 = vld [vmem:[%s452 + $0x1d0] sm:$0xff]
      %v512 = vld [vmem:[%s452 + $0x1d8] sm:$0xff]
      %v513 = vld [vmem:[%s452 + $0x1e0] sm:$0xff]
      %v514 = vld [vmem:[%s452 + $0x1e8] sm:$0xff]
      %v515 = vld [vmem:[%s452 + $0x1f0] sm:$0xff]
      %v516 = vld [vmem:[%s452 + $0x1f8] sm:$0xff]
      %517 = vmatpush.msra.mxu0 %v483
      %518 = vmatpush.msra.mxu0 %v481
      %519 = vmatpush.msra.mxu0 %v479
      %520 = vmatpush.msra.mxu0 %v477
      %521 = vmatpush.msra.mxu0 %v475
      %522 = vmatpush.msra.mxu0 %v473
      %523 = vmatpush.msra.mxu0 %v471
      %524 = vmatpush.msra.mxu0 %v469
      %525 = vmatpush.msra.mxu0 %v467
      %526 = vmatpush.msra.mxu0 %v465
      %527 = vmatpush.msra.mxu0 %v463
      %528 = vmatpush.msra.mxu0 %v461
      %529 = vmatpush.msra.mxu0 %v459
      %530 = vmatpush.msra.mxu0 %v457
      %531 = vmatpush.msra.mxu0 %v455
      %532 = vmatpush.msra.mxu0 %v453
      %533 = vmatmul.f32.gmra.mxu0 %v378
      %v534 = vpop.f32.mrf.mxu0
      %v535 = vadd.f32 0.0, %v534
      %536 = vdwg.mxu0
      %537 = vmatpush.msra.mxu0 %v515
      %538 = vmatpush.msra.mxu0 %v513
      %539 = vmatpush.msra.mxu0 %v511
      %540 = vmatpush.msra.mxu0 %v509
      %541 = vmatpush.msra.mxu0 %v507
      %542 = vmatpush.msra.mxu0 %v505
      %543 = vmatpush.msra.mxu0 %v503
      %544 = vmatpush.msra.mxu0 %v501
      %545 = vmatpush.msra.mxu0 %v499
      %546 = vmatpush.msra.mxu0 %v497
      %547 = vmatpush.msra.mxu0 %v495
      %548 = vmatpush.msra.mxu0 %v493
      %549 = vmatpush.msra.mxu0 %v491
      %550 = vmatpush.msra.mxu0 %v489
      %551 = vmatpush.msra.mxu0 %v487
      %552 = vmatpush.msra.mxu0 %v485
      %553 = vmatmul.f32.gmra.mxu0 %v387
      %v554 = vpop.f32.mrf.mxu0
      %v555 = vadd.f32 %v535, %v554
      %556 = vdwg.mxu0
      %557 = vmatpush.msra.mxu0 %v484
      %558 = vmatpush.msra.mxu0 %v482
      %559 = vmatpush.msra.mxu0 %v480
      %560 = vmatpush.msra.mxu0 %v478
      %561 = vmatpush.msra.mxu0 %v476
      %562 = vmatpush.msra.mxu0 %v474
      %563 = vmatpush.msra.mxu0 %v472
      %564 = vmatpush.msra.mxu0 %v470
      %565 = vmatpush.msra.mxu0 %v468
      %566 = vmatpush.msra.mxu0 %v466
      %567 = vmatpush.msra.mxu0 %v464
      %568 = vmatpush.msra.mxu0 %v462
      %569 = vmatpush.msra.mxu0 %v460
      %570 = vmatpush.msra.mxu0 %v458
      %571 = vmatpush.msra.mxu0 %v456
      %572 = vmatpush.msra.mxu0 %v454
      %573 = vmatmul.f32.gmra.mxu0 %v378
      %v574 = vpop.f32.mrf.mxu0
      %v575 = vadd.f32 0.0, %v574
      %576 = vdwg.mxu0
      %577 = vmatpush.msra.mxu0 %v516
      %578 = vmatpush.msra.mxu0 %v514
      %579 = vmatpush.msra.mxu0 %v512
      %580 = vmatpush.msra.mxu0 %v510
      %581 = vmatpush.msra.mxu0 %v508
      %582 = vmatpush.msra.mxu0 %v506
      %583 = vmatpush.msra.mxu0 %v504
      %584 = vmatpush.msra.mxu0 %v502
      %585 = vmatpush.msra.mxu0 %v500
      %586 = vmatpush.msra.mxu0 %v498
      %587 = vmatpush.msra.mxu0 %v496
      %588 = vmatpush.msra.mxu0 %v494
      %589 = vmatpush.msra.mxu0 %v492
      %590 = vmatpush.msra.mxu0 %v490
      %591 = vmatpush.msra.mxu0 %v488
      %592 = vmatpush.msra.mxu0 %v486
      %593 = vmatmul.f32.gmra.mxu0 %v387
      %v594 = vpop.f32.mrf.mxu0
      %v595 = vadd.f32 %v575, %v594
      %596 = vdwg.mxu0
      %597 = vmatpush.msra.mxu0 %v418
      %598 = vmatpush.msra.mxu0 %v416
      %599 = vmatpush.msra.mxu0 %v414
      %600 = vmatpush.msra.mxu0 %v412
      %601 = vmatpush.msra.mxu0 %v410
      %602 = vmatpush.msra.mxu0 %v408
      %603 = vmatpush.msra.mxu0 %v406
      %604 = vmatpush.msra.mxu0 %v404
      %605 = vmatpush.msra.mxu0 %v402
      %606 = vmatpush.msra.mxu0 %v400
      %607 = vmatpush.msra.mxu0 %v398
      %608 = vmatpush.msra.mxu0 %v396
      %609 = vmatpush.msra.mxu0 %v394
      %610 = vmatpush.msra.mxu0 %v392
      %611 = vmatpush.msra.mxu0 %v390
      %612 = vmatpush.msra.mxu0 %v388
      %613 = vmatmul.f32.gmra.mxu0 %v368
      %v614 = vpop.f32.mrf.mxu0
      %v615 = vadd.f32 %v555, %v614
      %616 = vdwg.mxu0
      %617 = vmatpush.msra.mxu0 %v450
      %618 = vmatpush.msra.mxu0 %v448
      %619 = vmatpush.msra.mxu0 %v446
      %620 = vmatpush.msra.mxu0 %v444
      %621 = vmatpush.msra.mxu0 %v442
      %622 = vmatpush.msra.mxu0 %v440
      %623 = vmatpush.msra.mxu0 %v438
      %624 = vmatpush.msra.mxu0 %v436
      %625 = vmatpush.msra.mxu0 %v434
      %626 = vmatpush.msra.mxu0 %v432
      %627 = vmatpush.msra.mxu0 %v430
      %628 = vmatpush.msra.mxu0 %v428
      %629 = vmatpush.msra.mxu0 %v426
      %630 = vmatpush.msra.mxu0 %v424
      %631 = vmatpush.msra.mxu0 %v422
      %632 = vmatpush.msra.mxu0 %v420
      %633 = vmatmul.f32.gmra.mxu0 %v369
      %v634 = vpop.f32.mrf.mxu0
      %v635 = vadd.f32 %v615, %v634
      %636 = vdwg.mxu0
      %637 = vmatpush.msra.mxu0 %v419
      %638 = vmatpush.msra.mxu0 %v417
      %639 = vmatpush.msra.mxu0 %v415
      %640 = vmatpush.msra.mxu0 %v413
      %641 = vmatpush.msra.mxu0 %v411
      %642 = vmatpush.msra.mxu0 %v409
      %643 = vmatpush.msra.mxu0 %v407
      %644 = vmatpush.msra.mxu0 %v405
      %645 = vmatpush.msra.mxu0 %v403
      %646 = vmatpush.msra.mxu0 %v401
      %647 = vmatpush.msra.mxu0 %v399
      %648 = vmatpush.msra.mxu0 %v397
      %649 = vmatpush.msra.mxu0 %v395
      %650 = vmatpush.msra.mxu0 %v393
      %651 = vmatpush.msra.mxu0 %v391
      %652 = vmatpush.msra.mxu0 %v389
      %653 = vmatmul.f32.gmra.mxu0 %v368
      %v654 = vpop.f32.mrf.mxu0
      %v655 = vadd.f32 %v595, %v654
      %656 = vdwg.mxu0
      %657 = vmatpush.msra.mxu0 %v451
      %658 = vmatpush.msra.mxu0 %v449
      %659 = vmatpush.msra.mxu0 %v447
      %660 = vmatpush.msra.mxu0 %v445
      %661 = vmatpush.msra.mxu0 %v443
      %662 = vmatpush.msra.mxu0 %v441
      %663 = vmatpush.msra.mxu0 %v439
      %664 = vmatpush.msra.mxu0 %v437
      %665 = vmatpush.msra.mxu0 %v435
      %666 = vmatpush.msra.mxu0 %v433
      %667 = vmatpush.msra.mxu0 %v431
      %668 = vmatpush.msra.mxu0 %v429
      %669 = vmatpush.msra.mxu0 %v427
      %670 = vmatpush.msra.mxu0 %v425
      %671 = vmatpush.msra.mxu0 %v423
      %672 = vmatpush.msra.mxu0 %v421
      %673 = vmatmul.f32.gmra.mxu0 %v369
      %v674 = vpop.f32.mrf.mxu0
      %v675 = vadd.f32 %v655, %v674
      %676 = vdwg.mxu0
      %v677 = vxor.u32 %v635, 2147483648
      %v678 = vxor.u32 %v675, 2147483648
      %v679 = vmul.f32 %v677, 1.442695
      %v680 = vpow.pop %v679
      %v681 = vmul.f32 %v678, 1.442695
      %v682 = vpow.pop %v681
      %v683 = vadd.f32 %v680, 1.0
      %v684 = vadd.f32 %v682, 1.0
      %v685 = vrcp.pop %v683
      %v686 = vmul.f32 %v683, %v685
      %v687 = vsub.f32 1.0, %v686
      %v688 = vmul.f32 %v685, %v687
      %v689 = vadd.f32 %v685, %v688
      %vm690 = vweird.f32 %v683
      %vm691 = vweird.f32 %v685
      %vm692 = vmor %vm690, %vm691
      %v693 = vsel %vm692, %v685, %v689
      %v694 = vand.u32 2147483647, %v683
      %vm695 = vcmp.eq.f32.partialorder %v694, 8.507059e+37
      %v696 = vand.u32 %v683, 2147483648
      %v697 = vor.u32 1.1754944e-38, %v696
      %v698 = vsel %vm695, %v697, %v693
      %v699 = vmul.f32 1.0, %v698
      %v700 = vrcp.pop %v684
      %v701 = vmul.f32 %v684, %v700
      %v702 = vsub.f32 1.0, %v701
      %v703 = vmul.f32 %v700, %v702
      %v704 = vadd.f32 %v700, %v703
      %vm705 = vweird.f32 %v684
      %vm706 = vweird.f32 %v700
      %vm707 = vmor %vm705, %vm706
      %v708 = vsel %vm707, %v700, %v704
      %v709 = vand.u32 2147483647, %v684
      %vm710 = vcmp.eq.f32.partialorder %v709, 8.507059e+37
      %v711 = vand.u32 %v684, 2147483648
      %v712 = vor.u32 1.1754944e-38, %v711
      %v713 = vsel %vm710, %v712, %v708
      %v714 = vmul.f32 1.0, %v713
      %v715 = vperm.slane %v699, 0
      %v716 = vperm.slane %v714, 0
      %v717 = vmul.f32 %v342, %v715
      %v718 = vmul.f32 %v343, %v716
      %v719 = vmul.f32 %v344, %v715
      %v720 = vmul.f32 %v345, %v716
      %v721 = vmul.f32 %v346, %v715
      %v722 = vmul.f32 %v347, %v716
      %v723 = vmul.f32 %v348, %v715
      %v724 = vmul.f32 %v349, %v716
      %725 = vst [vmem:[%s197] sm:$0xff] %v717
      %726 = vst [vmem:[%s197 + $0x8] sm:$0xff] %v718
      %727 = vst [vmem:[%s197 + $0x10] sm:$0xff] %v719
      %728 = vst [vmem:[%s197 + $0x18] sm:$0xff] %v720
      %729 = vst [vmem:[%s197 + $0x20] sm:$0xff] %v721
      %730 = vst [vmem:[%s197 + $0x28] sm:$0xff] %v722
      %731 = vst [vmem:[%s197 + $0x30] sm:$0xff] %v723
      %732 = vst [vmem:[%s197 + $0x38] sm:$0xff] %v724
      %p733 = scmp.lt.s32.totalorder %s15, 3
      %s734 = scalar_select %p733, %s15, 3
      %s735 = smul.addr %s734, 8
      %s736 = smul.addr %s735, 8
      %s737 = scalar_lea.vmem %s4, %s736
      // Predicated region
      $region37: #{cbam_pallas.1} parent=35 // pred_check
        %p738 = pneg %p122
      $region38: #{cbam_pallas.1} parent=35 // pred_check_branch
        %740 = sbr.rel (%p738) target = $region40
      $region39: #{cbam_pallas.1} parent=35 // pred_region
        _
      $region40: #{cbam_pallas.1} parent=35 // pred_fallthru
        _
    $region36: #{cbam_pallas.1} parent=5 // pred_fallthru
      _
    %p741 = scmp.le.s32.totalorder 2, %s10
    // Predicated region
    $region41: #{cbam_pallas.1} parent=5 // pred_check
      %p742 = pneg %p741
    $region42: #{cbam_pallas.1} parent=5 // pred_check_branch
      %744 = sbr.rel (%p742) target = $region44
    $region43: #{cbam_pallas.1} parent=5 // pred_region
      %s745 = ssub.s32 %s10, 2
      // Predicated region
      $region45: #{cbam_pallas.1} parent=43 // pred_check
        %p746 = pneg %p128
      $region46: #{cbam_pallas.1} parent=43 // pred_check_branch
        %748 = sbr.rel (%p746) target = $region48
      $region47: #{cbam_pallas.1} parent=43 // pred_region
        %p749 = scmp.lt.s32.totalorder %s16, 3
        %s750 = scalar_select %p749, %s16, 3
        %s751 = smul.addr %s750, 8
        %s752 = smul.addr %s751, 8
        %s753 = scalar_lea.vmem %s4, %s752
      $region48: #{cbam_pallas.1} parent=43 // pred_fallthru
        _
    $region44: #{cbam_pallas.1} parent=5 // pred_fallthru
      _
  $region6: #{cbam_pallas.1} parent=0 // loop_footer
    %s14 = sadd.s32 1, %s10
  $region7: #{cbam_pallas.1} parent=0 // loop_footer_branch
    %9 = sbr.rel target = $region3
  $region8: #{cbam_pallas.1} parent=0 // loop_exit
    _

</llo_original>
